<compile_context>
chip_gen: v7x
topology: tpu7x:2x2x1
jax: 0.10.0
libtpu: 0.0.40
codegen_flags: <defaults>
</compile_context>

<pallas_src>
import functools
import math

import jax
import jax.numpy as jnp
from jax.experimental import pallas as pl
from jax.experimental.pallas import tpu as pltpu


def make_positional_encodings(d_model: int, max_len: int = 5000,
                              dtype=jnp.float32) -> jnp.ndarray:
    """Deterministic buffer, identical to the PyTorch __init__ (d_model even)."""
    position = jnp.arange(max_len, dtype=jnp.float32)[:, None]              # (max_len, 1)
    div_term = jnp.exp(
        jnp.arange(0, d_model, 2, dtype=jnp.float32) * (-math.log(10000.0) / d_model))
    enc = jnp.zeros((max_len, d_model), dtype=jnp.float32)
    enc = enc.at[:, 0::2].set(jnp.sin(position * div_term))
    enc = enc.at[:, 1::2].set(jnp.cos(position * div_term))
    # unsqueeze(0).transpose(0, 1) -> (max_len, 1, d_model)
    return enc[:, None, :].astype(dtype)


def _pe_add_kernel(x_ref, pe_ref, o_ref, *, batch: int):
    pe = pe_ref[...].astype(x_ref.dtype)                 # (tS, D)
    if batch > 1:
        # Widen the PE tile once along the lane axis so the add and the store
        # below are full-width vector ops on the (tS, B*D) tile.
        pe = jnp.tile(pe, (1, batch))                    # (tS, B*D)
    o_ref[...] = x_ref[...] + pe


def _row_tile(S: int, row_bytes: int, target_bytes: int) -> int:
    """Rows per tile: multiple of 8, x-tile roughly <= target_bytes, capped at S."""
    rows = (target_bytes // max(row_bytes, 1)) // 8 * 8
    rows = max(rows, 8)
    return S if rows >= S else rows


def positional_encoding_forward(x: jnp.ndarray, encodings: jnp.ndarray, *,
                                tile_target_bytes: int = 2 * 1024 * 1024) -> jnp.ndarray:
    """x: (S, B, D).  encodings: (max_len, 1, D).  Returns x + encodings[:S, :1, :]."""
    S, B, D = x.shape
    max_len = encodings.shape[0]
    assert encodings.shape[2] == D, "d_model mismatch between x and encoding buffer"
    assert S <= max_len, "sequence length exceeds max_len of the encoding buffer"

    # Free (contiguous) reshapes: lane-dense 2-D views, no HBM copies.
    x2 = x.reshape(S, B * D)                              # S -> sublanes, B*D -> lanes
    pe2 = encodings.reshape(max_len, D)                   # full buffer; tiles chosen by index_map

    tS = _row_tile(S, B * D * x.dtype.itemsize, tile_target_bytes)
    grid = (pl.cdiv(S, tS),)

    out2 = pl.pallas_call(
        functools.partial(_pe_add_kernel, batch=B),
        out_shape=jax.ShapeDtypeStruct((S, B * D), x.dtype),
        grid=grid,
        in_specs=[
            pl.BlockSpec((tS, B * D), lambda i: (i, 0)),   # x tile
            pl.BlockSpec((tS, D), lambda i: (i, 0)),       # matching PE rows (broadcast over B in-kernel)
        ],
        out_specs=pl.BlockSpec((tS, B * D), lambda i: (i, 0)),
        compiler_params=pltpu.CompilerParams(
            dimension_semantics=("parallel",),
            vmem_limit_bytes=32 * 1024 * 1024,
        ),
    )(x2, pe2)

    return out2.reshape(S, B, D)


if __name__ == "__main__":
    d_model = 32
    max_len = 5000
    S, B = 64, 2

    encodings = make_positional_encodings(d_model, max_len)

    key = jax.random.PRNGKey(0)
    x = jax.random.normal(key, (S, B, d_model), dtype=jnp.float32)

    # Pure-JAX reference (matches the torch forward exactly: dim-1 slice clamps to 1).
    ref = x + encodings[:S, :1, :]

    # Default tiling (toy problem fits a single tile -> grid=(1,)).
    out = jax.block_until_ready(positional_encoding_forward(x, encodings))
    assert out.shape == x.shape and out.dtype == x.dtype
    assert jnp.allclose(out, ref, atol=1e-6, rtol=1e-6)

    # Tiny tile target forces several S-tiles, exercising the pipelined grid
    # and the PE index_map on the full (max_len, D) buffer.
    out_tiled = jax.block_until_ready(
        positional_encoding_forward(x, encodings, tile_target_bytes=4096))
    assert jnp.allclose(out_tiled, ref, atol=1e-6, rtol=1e-6)

    print("KERNEL_OK")
</pallas_src>

<mosaic_0001>
module attributes {stable_mosaic.version = 11 : i64} {
  func.func @_pe_add_kernel(%arg0: i32, %arg1: memref<64x64xf32, #tpu.memory_space<vmem>>, %arg2: memref<64x32xf32, #tpu.memory_space<vmem>>, %arg3: memref<64x64xf32, #tpu.memory_space<vmem>>) attributes {dimension_semantics = [#tpu.dimension_semantics<parallel>], iteration_bounds = array<i64: 1>, scalar_prefetch = 0 : i64, scratch_operands = 0 : i64, tpu.core_type = #tpu.core_type<tc>, window_params = [{transform_indices = @transform_0, window_bounds = array<i64: 64, 64>}, {transform_indices = @transform_1, window_bounds = array<i64: 64, 32>}, {transform_indices = @transform_2, window_bounds = array<i64: 64, 64>}]} {
    %c0 = arith.constant 0 : index
    %c0_0 = arith.constant 0 : index
    %0 = vector.load %arg2[%c0, %c0_0] : memref<64x32xf32, #tpu.memory_space<vmem>>, vector<64x32xf32>
    %1 = tpu.concatenate %0, %0 in 1 : vector<64x32xf32>, vector<64x32xf32> -> vector<64x64xf32>
    %c0_1 = arith.constant 0 : index
    %c0_2 = arith.constant 0 : index
    %2 = vector.load %arg1[%c0_1, %c0_2] : memref<64x64xf32, #tpu.memory_space<vmem>>, vector<64x64xf32>
    %3 = arith.addf %2, %1 : vector<64x64xf32>
    %c0_3 = arith.constant 0 : index
    %c0_4 = arith.constant 0 : index
    %4 = vector.load %arg3[%c0_3, %c0_4] : memref<64x64xf32, #tpu.memory_space<vmem>>, vector<64x64xf32>
    tpu.vector_store %arg3[%c0_3, %c0_4], %3 {strides = array<i32>} : memref<64x64xf32, #tpu.memory_space<vmem>>, vector<64x64xf32>,
    return
  }
  func.func @transform_0(%arg0: i32) -> (i32, i32) {
    %c0_i32 = arith.constant 0 : i32
    %c0_i32_0 = arith.constant 0 : i32
    return %arg0, %c0_i32 : i32, i32
  }
  func.func @transform_1(%arg0: i32) -> (i32, i32) {
    %c0_i32 = arith.constant 0 : i32
    %c0_i32_0 = arith.constant 0 : i32
    return %arg0, %c0_i32 : i32, i32
  }
  func.func @transform_2(%arg0: i32) -> (i32, i32) {
    %c0_i32 = arith.constant 0 : i32
    %c0_i32_0 = arith.constant 0 : i32
    return %arg0, %c0_i32 : i32, i32
  }
}

</mosaic_0001>

<llo_original>
// kernel: tpu_custom_call.1
$region0: #{tpu_custom_call.1}
  #allocation0 [shape = 'u32[]', space=smem, size = 0x4, offset = 0x4, fixed_abs, tag = 'smem constant byte address 0x4 - core index']
  #allocation1 [shape = 'u32[144,128]{1,0:T(1,128)}', space=vmem, size = 0x12000, scoped, tag = 'internal scratch']
  %s0 = inlined_call_operand.vmem [shape: f32[64,64], index: 0, kind: input, shape index: {}]
  %s1 = inlined_call_operand.vmem [shape: f32[5000,32], index: 1, kind: input, shape index: {}]
  %s2 = inlined_call_operand.hbm [shape: f32[64,64], index: 2, kind: output, shape index: {}]
  %s3 = sld [smem:[#allocation0]]
  $region18: #{tpu_custom_call.1} parent=0
    _
  %s5 = ssub.s32 1, %s3
  %s6 = scalar_select 0, %s5, %s3
  $region1: #{tpu_custom_call.1} parent=0
    #allocation2 [shape = 'u8[32768]{0}', space=vmem, size = 0x8000, scoped, tag = 'output window, operand 0, single buffered']
    #allocation3 [shape = 's32[1]{0}', space=sflag, size = 0x4, scoped, tag = 'scoped memory for tpu_custom_call.1']
    %7 = vsyncpa [#allocation3], 0
    // Predicated region
    $region2: #{tpu_custom_call.1} parent=1 // pred_check
      _
    $region3: #{tpu_custom_call.1} parent=1 // pred_check_branch
      %9 = sbr.rel (0) target = $region5
    $region4: #{tpu_custom_call.1} parent=1 // pred_region
      _
    $region5: #{tpu_custom_call.1} parent=1 // pred_fallthru
      _
    // Predicated region
    $region6: #{tpu_custom_call.1} parent=1 // pred_check
      _
    $region7: #{tpu_custom_call.1} parent=1 // pred_check_branch
      %11 = sbr.rel (0) target = $region9
    $region8: #{tpu_custom_call.1} parent=1 // pred_region
      _
    $region9: #{tpu_custom_call.1} parent=1 // pred_fallthru
      _
    %v12 = vld [vmem:[%s1] sm:$0xff]
    %v13 = vld [vmem:[%s1 + $0x8] sm:$0xff]
    %v14 = vld [vmem:[%s1 + $0x10] sm:$0xff]
    %v15 = vld [vmem:[%s1 + $0x18] sm:$0xff]
    %v16 = vld [vmem:[%s1 + $0x20] sm:$0xff]
    %v17 = vld [vmem:[%s1 + $0x28] sm:$0xff]
    %v18 = vld [vmem:[%s1 + $0x30] sm:$0xff]
    %v19 = vld [vmem:[%s1 + $0x38] sm:$0xff]
    %28 = vrot.lane.b32.xlu0 %v12, 32
    %v29 = vpop.permute.xlu0 %28
    %30 = vrot.lane.b32.xlu0 %v13, 32
    %v31 = vpop.permute.xlu0 %30
    %32 = vrot.lane.b32.xlu0 %v14, 32
    %v33 = vpop.permute.xlu0 %32
    %34 = vrot.lane.b32.xlu0 %v15, 32
    %v35 = vpop.permute.xlu0 %34
    %36 = vrot.lane.b32.xlu0 %v16, 32
    %v37 = vpop.permute.xlu0 %36
    %38 = vrot.lane.b32.xlu0 %v17, 32
    %v39 = vpop.permute.xlu0 %38
    %40 = vrot.lane.b32.xlu0 %v18, 32
    %v41 = vpop.permute.xlu0 %40
    %42 = vrot.lane.b32.xlu0 %v19, 32
    %v43 = vpop.permute.xlu0 %42
    %vm52 = vcmask 261120
    %v53 = vsel %vm52, %v12, %v29
    %v54 = vsel %vm52, %v13, %v31
    %v55 = vsel %vm52, %v14, %v33
    %v56 = vsel %vm52, %v15, %v35
    %v57 = vsel %vm52, %v16, %v37
    %v58 = vsel %vm52, %v17, %v39
    %v59 = vsel %vm52, %v18, %v41
    %v60 = vsel %vm52, %v19, %v43
    %v61 = vld [vmem:[%s0] sm:$0xff]
    %v62 = vld [vmem:[%s0 + $0x8] sm:$0xff]
    %v63 = vld [vmem:[%s0 + $0x10] sm:$0xff]
    %v64 = vld [vmem:[%s0 + $0x18] sm:$0xff]
    %v65 = vld [vmem:[%s0 + $0x20] sm:$0xff]
    %v66 = vld [vmem:[%s0 + $0x28] sm:$0xff]
    %v67 = vld [vmem:[%s0 + $0x30] sm:$0xff]
    %v68 = vld [vmem:[%s0 + $0x38] sm:$0xff]
    %v69 = vadd.f32 %v61, %v53
    %v70 = vadd.f32 %v62, %v54
    %v71 = vadd.f32 %v63, %v55
    %v72 = vadd.f32 %v64, %v56
    %v73 = vadd.f32 %v65, %v57
    %v74 = vadd.f32 %v66, %v58
    %v75 = vadd.f32 %v67, %v59
    %v76 = vadd.f32 %v68, %v60
    %vm77 = vcmask 523264
    %78 = vst.msk [vmem:[#allocation2] sm:$0xff] %vm77, %v69
    %79 = vst.msk [vmem:[#allocation2 + $0x8] sm:$0xff] %vm77, %v70
    %80 = vst.msk [vmem:[#allocation2 + $0x10] sm:$0xff] %vm77, %v71
    %81 = vst.msk [vmem:[#allocation2 + $0x18] sm:$0xff] %vm77, %v72
    %82 = vst.msk [vmem:[#allocation2 + $0x20] sm:$0xff] %vm77, %v73
    %83 = vst.msk [vmem:[#allocation2 + $0x28] sm:$0xff] %vm77, %v74
    %84 = vst.msk [vmem:[#allocation2 + $0x30] sm:$0xff] %vm77, %v75
    %85 = vst.msk [vmem:[#allocation2 + $0x38] sm:$0xff] %vm77, %v76
    // Predicated region
    $region10: #{tpu_custom_call.1} parent=1 // pred_check
      _
    $region11: #{tpu_custom_call.1} parent=1 // pred_check_branch
      %87 = sbr.rel (0) target = $region13
    $region12: #{tpu_custom_call.1} parent=1 // pred_region
      %s89 = ssub.s32 1024, 1024
      %90 = vsyncadd [#allocation3], %s89
      %s91 = sshll.u32 [#allocation2], 4
      %s92 = int_to_ptr.vmem [resolvable:$true] %s91
      %97 = dma.vmem_to_hbm [thread:$0]  %s92, 1024, %s2, [#allocation3], 128, 128, 8
    $region13: #{tpu_custom_call.1} parent=1 // pred_fallthru
      _
    // Predicated region
    $region14: #{tpu_custom_call.1} parent=1 // pred_check
      _
    $region15: #{tpu_custom_call.1} parent=1 // pred_check_branch
      %99 = sbr.rel (0) target = $region17
    $region16: #{tpu_custom_call.1} parent=1 // pred_region
      %100 = dma.done [#allocation3], 1024
    $region17: #{tpu_custom_call.1} parent=1 // pred_fallthru
      _
    %101 = vsyncpa [#allocation3], 1

</llo_original>
